<compile_context>
chip_gen: v7x
topology: tpu7x:2x2x1
jax: 0.10.0
libtpu: 0.0.40
codegen_flags: <defaults>
</compile_context>

<pallas_src>
import jax
import jax.numpy as jnp
import numpy as np
from jax.experimental import pallas as pl
from jax.experimental.pallas import tpu as pltpu


# ---------------------------------------------------------------------------
# Kernel 1: attention pooling  h_b = sum_s softmax_s(<x_bs, w>) * x_bs
# Runs once per batch tile, outside the streaming-GEMM hot loop.
# Exact softmax (plain division; no approx reciprocal).
# ---------------------------------------------------------------------------
def attn_pool_kernel(item_emb_ref, temp_emb_ref, attn_w_ref, h_ref):
    x = item_emb_ref[...] + temp_emb_ref[...]             # (tb, seq, emb)  f32
    w = attn_w_ref[...]                                    # (1, 1, emb)
    scores = jnp.sum(x * w, axis=-1, keepdims=True)        # (tb, seq, 1)

    m = jnp.max(scores, axis=1, keepdims=True)             # (tb, 1, 1)
    e = jnp.exp(scores - m)                                # (tb, seq, 1)
    num = jnp.sum(x * e, axis=1)                           # (tb, emb)
    den = jnp.sum(e, axis=1)                               # (tb, 1)
    h_ref[...] = num / den                                 # exact reciprocal


# ---------------------------------------------------------------------------
# Kernel 2: streaming logits GEMM   out[b, j] = h_tile @ Wt_tile
#   Wt is the target table pre-transposed at init to (emb, n_items), streamed
#   in lane-dense (emb, tile_n) blocks.  f32 accumulation on the MXU.
# ---------------------------------------------------------------------------
def logits_kernel(h_ref, wt_ref, out_ref):
    wt = wt_ref[...]                                       # (emb, tile_n)  f32/bf16
    h = h_ref[...].astype(wt.dtype)                        # (tile_b, emb)
    out_ref[...] = jnp.dot(
        h, wt, preferred_element_type=jnp.float32).astype(out_ref.dtype)


def atem_forward_pallas(item_emb, temporal_emb, attn_w, target_table_t,
                        *, tile_n=2048, tile_b=None, out_dtype=jnp.float32):
    """item_emb / temporal_emb: (bs, seq, emb) f32; attn_w: (1, 1, emb);
    target_table_t: (emb, n_items), f32 or bf16 (pre-transposed at init)."""
    bs, seq, emb = item_emb.shape
    emb_t, n_items = target_table_t.shape
    assert emb_t == emb

    # Pad batch to a sublane multiple (>= 8 for f32): unmasked stores, full MXU rows.
    bs_p = max(8, ((bs + 7) // 8) * 8)
    if bs_p != bs:
        pad = ((0, bs_p - bs), (0, 0), (0, 0))
        item_emb = jnp.pad(item_emb, pad)
        temporal_emb = jnp.pad(temporal_emb, pad)

    # --- stage 1: attention pooling (once per call, grid over batch only) -----
    # Batch tile sized so 2 inputs x 2 pipeline buffers of (tile, seq, emb) f32
    # stay within a few MiB regardless of seq.
    pool_budget = 8 * 1024 * 1024
    per_row_pool = 4 * seq * emb * 4           # 2 inputs x 2 buffers x f32
    pool_tile_b = min(bs_p, max(8, (pool_budget // per_row_pool) // 8 * 8))

    h = pl.pallas_call(
        attn_pool_kernel,
        out_shape=jax.ShapeDtypeStruct((bs_p, emb), jnp.float32),
        grid_spec=pltpu.PrefetchScalarGridSpec(
            num_scalar_prefetch=0,
            grid=(pl.cdiv(bs_p, pool_tile_b),),
            in_specs=[
                pl.BlockSpec((pool_tile_b, seq, emb), lambda b: (b, 0, 0)),
                pl.BlockSpec((pool_tile_b, seq, emb), lambda b: (b, 0, 0)),
                pl.BlockSpec((1, 1, emb), lambda b: (0, 0, 0)),
            ],
            out_specs=pl.BlockSpec((pool_tile_b, emb), lambda b: (b, 0)),
        ),
        compiler_params=pltpu.CompilerParams(
            dimension_semantics=("parallel",)),
    )(item_emb, temporal_emb, attn_w)

    # --- stage 2: streaming logits GEMM ----------------------------------------
    if n_items >= 128:
        tile_n = min(tile_n, n_items)
        tile_n = max(128, (tile_n // 128) * 128)   # lane-dense W / output tiles
    else:
        tile_n = n_items                           # tiny table: single full block

    out_elt = jnp.dtype(out_dtype).itemsize
    w_elt = target_table_t.dtype.itemsize
    if tile_b is None:
        # Cover the whole padded batch if the VMEM budget allows, so the target
        # table streams from HBM once per call.  Budget is conservative enough
        # for v5e's 16 MiB scoped default (and leaves headroom on v7x's 64 MiB).
        budget = 12 * 1024 * 1024
        w_tile_bytes = 2 * emb * tile_n * w_elt                 # 2 pipeline buffers
        per_row = 2 * (emb * 4 + tile_n * out_elt)              # h + out buffers
        tile_b = max(8, min(bs_p, (budget - w_tile_bytes) // per_row))
    tile_b = min(tile_b, bs_p)
    tile_b = max(8, (tile_b // 8) * 8)

    grid = (pl.cdiv(bs_p, tile_b), pl.cdiv(n_items, tile_n))

    out = pl.pallas_call(
        logits_kernel,
        out_shape=jax.ShapeDtypeStruct((bs_p, n_items), out_dtype),
        grid_spec=pltpu.PrefetchScalarGridSpec(
            num_scalar_prefetch=0,
            grid=grid,
            in_specs=[
                pl.BlockSpec((tile_b, emb), lambda b, j: (b, 0)),
                # Streamed, double-buffered W tiles; default depth is enough (the
                # kernel is HBM-bandwidth bound, deeper buffering just spends VMEM).
                pl.BlockSpec((emb, tile_n), lambda b, j: (0, j)),
            ],
            out_specs=pl.BlockSpec((tile_b, tile_n), lambda b, j: (b, j)),
        ),
        compiler_params=pltpu.CompilerParams(
            # No cross-tile state after hoisting h -> both axes independent;
            # lets v7x shard tiles across its 2 TensorCores (no-op on v5e/v6e).
            dimension_semantics=("parallel", "parallel")),
    )(h, target_table_t)
    return out[:bs]


def atem_forward(params, h_iids, bucket_ids, *, tile_n=2048, tile_b=None,
                 out_dtype=jnp.float32):
    """Full ATEM forward: embedding lookups (glue) + Pallas kernels (hot path)."""
    item_emb = jnp.take(params["item_emb"], h_iids, axis=0)          # (bs, seq, emb)
    temporal_emb = jnp.take(params["temporal_emb"], bucket_ids, axis=0)
    return atem_forward_pallas(item_emb, temporal_emb, params["attn_w"],
                               params["target_emb_t"], tile_n=tile_n,
                               tile_b=tile_b, out_dtype=out_dtype)


def atem_forward_reference(params, h_iids, bucket_ids):
    """Pure-JAX reference mirroring the PyTorch module."""
    x = jnp.take(params["item_emb"], h_iids, axis=0) + \
        jnp.take(params["temporal_emb"], bucket_ids, axis=0)          # (bs, seq, emb)
    scores = jnp.einsum("bse,e->bs", x, params["attn_w"][0, 0])       # (bs, seq)
    a = jax.nn.softmax(scores, axis=1)[..., None]                     # (bs, seq, 1)
    h = jnp.sum(x * a, axis=1)                                        # (bs, emb)
    wt_t = params["target_emb_t"].astype(jnp.float32)                 # (emb, n_items)
    return h @ wt_t                                                   # (bs, n_items)


def init_params(key, n_items, n_buckets, emb_size, tie_emb=True,
                target_dtype=jnp.float32):
    k1, k2, k3, k4 = jax.random.split(key, 4)
    item_emb = jax.random.normal(k1, (n_items, emb_size), jnp.float32)
    item_emb = item_emb.at[0].set(0.0)          # padding_idx=0
    temporal_emb = jax.random.normal(k2, (n_buckets, emb_size), jnp.float32)
    temporal_emb = temporal_emb.at[0].set(0.0)  # padding_idx=0
    attn_w = jax.random.normal(k3, (1, 1, emb_size), jnp.float32) * 0.1
    if tie_emb:
        target_emb = item_emb
    else:
        target_emb = jax.random.normal(k4, (n_items, emb_size), jnp.float32)
        target_emb = target_emb.at[0].set(0.0)
    # One-time layout transform + dtype cast at init (outside the per-step hot path):
    # the kernel streams (emb, tile_n) blocks of the transposed table.
    target_emb_t = target_emb.T.astype(target_dtype)                  # (emb, n_items)
    return {
        "item_emb": item_emb,
        "temporal_emb": temporal_emb,
        "attn_w": attn_w,
        "target_emb_t": target_emb_t,
    }


if __name__ == "__main__":
    # Small, TPU-friendly correctness shapes; n_items=1024 with tile_n=256 exercises
    # the tiled / pipelined N axis (grid = (1, 4)).  (Perf tuning should use
    # production-sized tiles, not these.)
    n_items, n_buckets, emb_size = 1024, 16, 128
    bs, seq = 4, 8

    key = jax.random.PRNGKey(0)
    kp, ki, kb = jax.random.split(key, 3)

    params = init_params(kp, n_items, n_buckets, emb_size, tie_emb=True)
    h_iids = jax.random.randint(ki, (bs, seq), 1, n_items, dtype=jnp.int32)
    bucket_ids = jax.random.randint(kb, (bs, seq), 1, n_buckets, dtype=jnp.int32)

    # --- f32 table path ------------------------------------------------------
    logits = jax.block_until_ready(
        atem_forward(params, h_iids, bucket_ids, tile_n=256))
    ref = jax.block_until_ready(atem_forward_reference(params, h_iids, bucket_ids))
    assert logits.shape == (bs, n_items), logits.shape
    # Exact softmax now; remaining diff is MXU-pass precision vs XLA's matmul.
    np.testing.assert_allclose(np.asarray(logits), np.asarray(ref),
                               rtol=5e-3, atol=5e-3)

    # --- bf16 table path (halves HBM bytes streamed for W; f32 accumulation) --
    params_bf16 = dict(params,
                       target_emb_t=params["target_emb_t"].astype(jnp.bfloat16))
    logits_bf16 = jax.block_until_ready(
        atem_forward(params_bf16, h_iids, bucket_ids, tile_n=256))
    ref_bf16 = jax.block_until_ready(
        atem_forward_reference(params_bf16, h_iids, bucket_ids))
    np.testing.assert_allclose(np.asarray(logits_bf16), np.asarray(ref_bf16),
                               rtol=2e-2, atol=2e-1)

    print("KERNEL_OK")
</pallas_src>

<mosaic_0001>
module attributes {stable_mosaic.version = 11 : i64} {
  func.func @attn_pool_kernel(%arg0: i32, %arg1: memref<8x8x128xf32, #tpu.memory_space<vmem>>, %arg2: memref<8x8x128xf32, #tpu.memory_space<vmem>>, %arg3: memref<1x1x128xf32, #tpu.memory_space<vmem>>, %arg4: memref<8x128xf32, #tpu.memory_space<vmem>>) attributes {dimension_semantics = [#tpu.dimension_semantics<parallel>], iteration_bounds = array<i64: 1>, scalar_prefetch = 0 : i64, scratch_operands = 0 : i64, tpu.core_type = #tpu.core_type<tc>, window_params = [{transform_indices = @transform_0, window_bounds = array<i64: 8, 8, 128>}, {transform_indices = @transform_1, window_bounds = array<i64: 8, 8, 128>}, {pipeline_mode = #tpu.pipeline_mode<synchronous>, transform_indices = @transform_2, window_bounds = array<i64: 1, 1, 128>}, {transform_indices = @transform_3, window_bounds = array<i64: 8, 128>}]} {
    %c0 = arith.constant 0 : index
    %c0_0 = arith.constant 0 : index
    %c0_1 = arith.constant 0 : index
    %0 = vector.load %arg1[%c0, %c0_0, %c0_1] : memref<8x8x128xf32, #tpu.memory_space<vmem>>, vector<8x8x128xf32>
    %c0_2 = arith.constant 0 : index
    %c0_3 = arith.constant 0 : index
    %c0_4 = arith.constant 0 : index
    %1 = vector.load %arg2[%c0_2, %c0_3, %c0_4] : memref<8x8x128xf32, #tpu.memory_space<vmem>>, vector<8x8x128xf32>
    %2 = arith.addf %0, %1 : vector<8x8x128xf32>
    %c0_5 = arith.constant 0 : index
    %c0_6 = arith.constant 0 : index
    %c0_7 = arith.constant 0 : index
    %3 = vector.load %arg3[%c0_5, %c0_6, %c0_7] : memref<1x1x128xf32, #tpu.memory_space<vmem>>, vector<1x1x128xf32>
    %4 = vector.broadcast %3 : vector<1x1x128xf32> to vector<8x8x128xf32>
    %5 = arith.mulf %2, %4 : vector<8x8x128xf32>
    %cst = arith.constant dense<0.000000e+00> : vector<8x8xf32>
    %6 = vector.multi_reduction <add>, %5, %cst [2] : vector<8x8x128xf32> to vector<8x8xf32>
    %7 = vector.shape_cast %6 : vector<8x8xf32> to vector<8x8x1xf32>
    %cst_8 = arith.constant dense<0xFF800000> : vector<8x1xf32>
    %8 = vector.multi_reduction <maximumf>, %7, %cst_8 [1] : vector<8x8x1xf32> to vector<8x1xf32>
    %9 = vector.shape_cast %8 : vector<8x1xf32> to vector<8x1x1xf32>
    %10 = vector.broadcast %9 : vector<8x1x1xf32> to vector<8x8x1xf32>
    %11 = arith.subf %7, %10 : vector<8x8x1xf32>
    %12 = math.exp %11 : vector<8x8x1xf32>
    %13 = vector.broadcast %12 : vector<8x8x1xf32> to vector<8x8x128xf32>
    %14 = arith.mulf %2, %13 : vector<8x8x128xf32>
    %cst_9 = arith.constant dense<0.000000e+00> : vector<8x128xf32>
    %15 = vector.multi_reduction <add>, %14, %cst_9 [1] : vector<8x8x128xf32> to vector<8x128xf32>
    %cst_10 = arith.constant dense<0.000000e+00> : vector<8x1xf32>
    %16 = vector.multi_reduction <add>, %12, %cst_10 [1] : vector<8x8x1xf32> to vector<8x1xf32>
    %17 = vector.broadcast %16 : vector<8x1xf32> to vector<8x128xf32>
    %18 = arith.divf %15, %17 : vector<8x128xf32>
    %c0_11 = arith.constant 0 : index
    %c0_12 = arith.constant 0 : index
    %19 = vector.load %arg4[%c0_11, %c0_12] : memref<8x128xf32, #tpu.memory_space<vmem>>, vector<8x128xf32>
    tpu.vector_store %arg4[%c0_11, %c0_12], %18 {strides = array<i32>} : memref<8x128xf32, #tpu.memory_space<vmem>>, vector<8x128xf32>,
    return
  }
  func.func @transform_0(%arg0: i32) -> (i32, i32, i32) {
    %c0_i32 = arith.constant 0 : i32
    %c0_i32_0 = arith.constant 0 : i32
    %c0_i32_1 = arith.constant 0 : i32
    return %arg0, %c0_i32, %c0_i32_0 : i32, i32, i32
  }
  func.func @transform_1(%arg0: i32) -> (i32, i32, i32) {
    %c0_i32 = arith.constant 0 : i32
    %c0_i32_0 = arith.constant 0 : i32
    %c0_i32_1 = arith.constant 0 : i32
    return %arg0, %c0_i32, %c0_i32_0 : i32, i32, i32
  }
  func.func @transform_2(%arg0: i32) -> (i32, i32, i32) {
    %c0_i32 = arith.constant 0 : i32
    %c0_i32_0 = arith.constant 0 : i32
    %c0_i32_1 = arith.constant 0 : i32
    %c0_i32_2 = arith.constant 0 : i32
    return %c0_i32, %c0_i32_0, %c0_i32_1 : i32, i32, i32
  }
  func.func @transform_3(%arg0: i32) -> (i32, i32) {
    %c0_i32 = arith.constant 0 : i32
    %c0_i32_0 = arith.constant 0 : i32
    return %arg0, %c0_i32 : i32, i32
  }
}

</mosaic_0001>

<llo_original>
// kernel: tpu_custom_call.1
$region0: #{tpu_custom_call.1}
  #allocation0 [shape = 'u32[]', space=smem, size = 0x4, offset = 0x4, fixed_abs, tag = 'smem constant byte address 0x4 - core index']
  #allocation1 [shape = 'u32[144,128]{1,0:T(1,128)}', space=vmem, size = 0x12000, scoped, tag = 'internal scratch']
  %s0 = inlined_call_operand.hbm [shape: f32[8,8,128], index: 0, kind: input, shape index: {}]
  %s1 = inlined_call_operand.hbm [shape: f32[8,8,128], index: 1, kind: input, shape index: {}]
  %s2 = inlined_call_operand.vmem [shape: f32[1,1,128], index: 2, kind: input, shape index: {}]
  %s3 = inlined_call_operand.hbm [shape: f32[8,128], index: 3, kind: output, shape index: {}]
  %s4 = sld [smem:[#allocation0]]
  $region30: #{tpu_custom_call.1} parent=0
    _
  %s6 = ssub.s32 1, %s4
  %s7 = scalar_select 0, %s6, %s4
  $region1: #{tpu_custom_call.1} parent=0
    #allocation2 [shape = 'u8[32768]{0}', space=vmem, size = 0x8000, scoped, tag = 'input window, operand 0, single buffered']
    #allocation3 [shape = 's32[1]{0}', space=sflag, size = 0x4, scoped, tag = 'scoped memory for tpu_custom_call.1']
    #allocation4 [shape = 's32[1]{0}', space=sflag, size = 0x4, scoped, tag = 'scoped memory for tpu_custom_call.1']
    #allocation5 [shape = 'u8[32768]{0}', space=vmem, size = 0x8000, scoped, tag = 'input window, operand 1, single buffered']
    #allocation6 [shape = 's32[1]{0}', space=sflag, size = 0x4, scoped, tag = 'scoped memory for tpu_custom_call.1']
    #allocation7 [shape = 'u8[4096]{0}', space=vmem, size = 0x1000, scoped, tag = 'output window, operand 0, single buffered']
    %8 = vsyncpa [#allocation3], 0
    %9 = vsyncpa [#allocation6], 0
    %10 = vsyncpa [#allocation4], 0
    // Predicated region
    $region2: #{tpu_custom_call.1} parent=1 // pred_check
      _
    $region3: #{tpu_custom_call.1} parent=1 // pred_check_branch
      %12 = sbr.rel (0) target = $region5
    $region4: #{tpu_custom_call.1} parent=1 // pred_region
      %s14 = ssub.s32 1024, 1024
      %15 = vsyncadd [#allocation3], %s14
      %s16 = sshll.u32 [#allocation2], 4
      %s17 = int_to_ptr.vmem [resolvable:$true] %s16
      %22 = dma.hbm_to_vmem [thread:$0]  %s0, 1024, %s17, [#allocation3], 128, 128, 8
    $region5: #{tpu_custom_call.1} parent=1 // pred_fallthru
      _
    // Predicated region
    $region6: #{tpu_custom_call.1} parent=1 // pred_check
      _
    $region7: #{tpu_custom_call.1} parent=1 // pred_check_branch
      %24 = sbr.rel (0) target = $region9
    $region8: #{tpu_custom_call.1} parent=1 // pred_region
      %s26 = ssub.s32 1024, 1024
      %27 = vsyncadd [#allocation6], %s26
      %s28 = sshll.u32 [#allocation5], 4
      %s29 = int_to_ptr.vmem [resolvable:$true] %s28
      %34 = dma.hbm_to_vmem [thread:$0]  %s1, 1024, %s29, [#allocation6], 128, 128, 8
    $region9: #{tpu_custom_call.1} parent=1 // pred_fallthru
      _
    // Predicated region
    $region10: #{tpu_custom_call.1} parent=1 // pred_check
      _
    $region11: #{tpu_custom_call.1} parent=1 // pred_check_branch
      %36 = sbr.rel (0) target = $region13
    $region12: #{tpu_custom_call.1} parent=1 // pred_region
      _
    $region13: #{tpu_custom_call.1} parent=1 // pred_fallthru
      _
    // Predicated region
    $region14: #{tpu_custom_call.1} parent=1 // pred_check
      _
    $region15: #{tpu_custom_call.1} parent=1 // pred_check_branch
      %38 = sbr.rel (0) target = $region17
    $region16: #{tpu_custom_call.1} parent=1 // pred_region
      %39 = dma.done [#allocation3], 1024
    $region17: #{tpu_custom_call.1} parent=1 // pred_fallthru
      _
    // Predicated region
    $region18: #{tpu_custom_call.1} parent=1 // pred_check
      _
    $region19: #{tpu_custom_call.1} parent=1 // pred_check_branch
      %41 = sbr.rel (0) target = $region21
    $region20: #{tpu_custom_call.1} parent=1 // pred_region
      %42 = dma.done [#allocation6], 1024
    $region21: #{tpu_custom_call.1} parent=1 // pred_fallthru
      _
    %v43 = vld [vmem:[#allocation2] sm:$0xff]
    %v44 = vld [vmem:[#allocation2 + $0x8] sm:$0xff]
    %v45 = vld [vmem:[#allocation2 + $0x10] sm:$0xff]
    %v46 = vld [vmem:[#allocation2 + $0x18] sm:$0xff]
    %v47 = vld [vmem:[#allocation2 + $0x20] sm:$0xff]
    %v48 = vld [vmem:[#allocation2 + $0x28] sm:$0xff]
    %v49 = vld [vmem:[#allocation2 + $0x30] sm:$0xff]
    %v50 = vld [vmem:[#allocation2 + $0x38] sm:$0xff]
    %v51 = vld [vmem:[#allocation5] sm:$0xff]
    %v52 = vld [vmem:[#allocation5 + $0x8] sm:$0xff]
    %v53 = vld [vmem:[#allocation5 + $0x10] sm:$0xff]
    %v54 = vld [vmem:[#allocation5 + $0x18] sm:$0xff]
    %v55 = vld [vmem:[#allocation5 + $0x20] sm:$0xff]
    %v56 = vld [vmem:[#allocation5 + $0x28] sm:$0xff]
    %v57 = vld [vmem:[#allocation5 + $0x30] sm:$0xff]
    %v58 = vld [vmem:[#allocation5 + $0x38] sm:$0xff]
    %v59 = vadd.f32 %v43, %v51
    %v60 = vadd.f32 %v44, %v52
    %v61 = vadd.f32 %v45, %v53
    %v62 = vadd.f32 %v46, %v54
    %v63 = vadd.f32 %v47, %v55
    %v64 = vadd.f32 %v48, %v56
    %v65 = vadd.f32 %v49, %v57
    %v66 = vadd.f32 %v50, %v58
    %v67 = vld [vmem:[%s2] sm:$0x1]
    %v69 = vlaneseq
    %v70 = vshrl.u32 %v69, 7
    %v71 = vsub.s32 0, %v70
    %v72 = vrot.slane %v67, %v71
    %v74 = vmul.f32 %v59, %v72
    %v75 = vmul.f32 %v60, %v72
    %v76 = vmul.f32 %v61, %v72
    %v77 = vmul.f32 %v62, %v72
    %v78 = vmul.f32 %v63, %v72
    %v79 = vmul.f32 %v64, %v72
    %v80 = vmul.f32 %v65, %v72
    %v81 = vmul.f32 %v66, %v72
    %82 = vadd.xlane.f32.xlu0 %v74
    %v83 = vpop.xlane.xlu0 %82
    %84 = vadd.xlane.f32.xlu0 %v75
    %v85 = vpop.xlane.xlu0 %84
    %86 = vadd.xlane.f32.xlu0 %v76
    %v87 = vpop.xlane.xlu0 %86
    %88 = vadd.xlane.f32.xlu0 %v77
    %v89 = vpop.xlane.xlu0 %88
    %90 = vadd.xlane.f32.xlu0 %v78
    %v91 = vpop.xlane.xlu0 %90
    %92 = vadd.xlane.f32.xlu0 %v79
    %v93 = vpop.xlane.xlu0 %92
    %94 = vadd.xlane.f32.xlu0 %v80
    %v95 = vpop.xlane.xlu0 %94
    %96 = vadd.xlane.f32.xlu0 %v81
    %v97 = vpop.xlane.xlu0 %96
    %v98 = vrot.slane %v83, 4
    %v99 = vmax.f32 %v83, %v98
    %v100 = vrot.slane %v99, 2
    %v101 = vmax.f32 %v99, %v100
    %v102 = vrot.slane %v101, 1
    %v103 = vmax.f32 %v101, %v102
    %v104 = vrot.slane %v85, 4
    %v105 = vmax.f32 %v85, %v104
    %v106 = vrot.slane %v105, 2
    %v107 = vmax.f32 %v105, %v106
    %v108 = vrot.slane %v107, 1
    %v109 = vmax.f32 %v107, %v108
    %v110 = vrot.slane %v87, 4
    %v111 = vmax.f32 %v87, %v110
    %v112 = vrot.slane %v111, 2
    %v113 = vmax.f32 %v111, %v112
    %v114 = vrot.slane %v113, 1
    %v115 = vmax.f32 %v113, %v114
    %v116 = vrot.slane %v89, 4
    %v117 = vmax.f32 %v89, %v116
    %v118 = vrot.slane %v117, 2
    %v119 = vmax.f32 %v117, %v118
    %v120 = vrot.slane %v119, 1
    %v121 = vmax.f32 %v119, %v120
    %v122 = vrot.slane %v91, 4
    %v123 = vmax.f32 %v91, %v122
    %v124 = vrot.slane %v123, 2
    %v125 = vmax.f32 %v123, %v124
    %v126 = vrot.slane %v125, 1
    %v127 = vmax.f32 %v125, %v126
    %v128 = vrot.slane %v93, 4
    %v129 = vmax.f32 %v93, %v128
    %v130 = vrot.slane %v129, 2
    %v131 = vmax.f32 %v129, %v130
    %v132 = vrot.slane %v131, 1
    %v133 = vmax.f32 %v131, %v132
    %v134 = vrot.slane %v95, 4
    %v135 = vmax.f32 %v95, %v134
    %v136 = vrot.slane %v135, 2
    %v137 = vmax.f32 %v135, %v136
    %v138 = vrot.slane %v137, 1
    %v139 = vmax.f32 %v137, %v138
    %v140 = vrot.slane %v97, 4
    %v141 = vmax.f32 %v97, %v140
    %v142 = vrot.slane %v141, 2
    %v143 = vmax.f32 %v141, %v142
    %v144 = vrot.slane %v143, 1
    %v145 = vmax.f32 %v143, %v144
    %v146 = vsub.f32 %v83, %v103
    %v147 = vsub.f32 %v85, %v109
    %v148 = vsub.f32 %v87, %v115
    %v149 = vsub.f32 %v89, %v121
    %v150 = vsub.f32 %v91, %v127
    %v151 = vsub.f32 %v93, %v133
    %v152 = vsub.f32 %v95, %v139
    %v153 = vsub.f32 %v97, %v145
    %v154 = vmul.f32 %v146, 1.442695
    %v155 = vpow.pop %v154
    %v156 = vmul.f32 %v147, 1.442695
    %v157 = vpow.pop %v156
    %v158 = vmul.f32 %v148, 1.442695
    %v159 = vpow.pop %v158
    %v160 = vmul.f32 %v149, 1.442695
    %v161 = vpow.pop %v160
    %v162 = vmul.f32 %v150, 1.442695
    %v163 = vpow.pop %v162
    %v164 = vmul.f32 %v151, 1.442695
    %v165 = vpow.pop %v164
    %v166 = vmul.f32 %v152, 1.442695
    %v167 = vpow.pop %v166
    %v168 = vmul.f32 %v153, 1.442695
    %v169 = vpow.pop %v168
    %v170 = vmul.f32 %v59, %v155
    %v171 = vmul.f32 %v60, %v157
    %v172 = vmul.f32 %v61, %v159
    %v173 = vmul.f32 %v62, %v161
    %v174 = vmul.f32 %v63, %v163
    %v175 = vmul.f32 %v64, %v165
    %v176 = vmul.f32 %v65, %v167
    %v177 = vmul.f32 %v66, %v169
    %v178 = vrot.slane %v170, 4
    %v179 = vadd.f32 %v170, %v178
    %v180 = vrot.slane %v179, 2
    %v181 = vadd.f32 %v179, %v180
    %v182 = vrot.slane %v181, 1
    %v183 = vadd.f32 %v181, %v182
    %v184 = vrot.slane %v171, 4
    %v185 = vadd.f32 %v171, %v184
    %v186 = vrot.slane %v185, 2
    %v187 = vadd.f32 %v185, %v186
    %v188 = vrot.slane %v187, 1
    %v189 = vadd.f32 %v187, %v188
    %v190 = vrot.slane %v172, 4
    %v191 = vadd.f32 %v172, %v190
    %v192 = vrot.slane %v191, 2
    %v193 = vadd.f32 %v191, %v192
    %v194 = vrot.slane %v193, 1
    %v195 = vadd.f32 %v193, %v194
    %v196 = vrot.slane %v173, 4
    %v197 = vadd.f32 %v173, %v196
    %v198 = vrot.slane %v197, 2
    %v199 = vadd.f32 %v197, %v198
    %v200 = vrot.slane %v199, 1
    %v201 = vadd.f32 %v199, %v200
    %v202 = vrot.slane %v174, 4
    %v203 = vadd.f32 %v174, %v202
    %v204 = vrot.slane %v203, 2
    %v205 = vadd.f32 %v203, %v204
    %v206 = vrot.slane %v205, 1
    %v207 = vadd.f32 %v205, %v206
    %v208 = vrot.slane %v175, 4
    %v209 = vadd.f32 %v175, %v208
    %v210 = vrot.slane %v209, 2
    %v211 = vadd.f32 %v209, %v210
    %v212 = vrot.slane %v211, 1
    %v213 = vadd.f32 %v211, %v212
    %v214 = vrot.slane %v176, 4
    %v215 = vadd.f32 %v176, %v214
    %v216 = vrot.slane %v215, 2
    %v217 = vadd.f32 %v215, %v216
    %v218 = vrot.slane %v217, 1
    %v219 = vadd.f32 %v217, %v218
    %v220 = vrot.slane %v177, 4
    %v221 = vadd.f32 %v177, %v220
    %v222 = vrot.slane %v221, 2
    %v223 = vadd.f32 %v221, %v222
    %v224 = vrot.slane %v223, 1
    %v225 = vadd.f32 %v223, %v224
    %v226 = vrot.slane %v155, 4
    %v227 = vadd.f32 %v155, %v226
    %v228 = vrot.slane %v227, 2
    %v229 = vadd.f32 %v227, %v228
    %v230 = vrot.slane %v229, 1
    %v231 = vadd.f32 %v229, %v230
    %v232 = vrot.slane %v157, 4
    %v233 = vadd.f32 %v157, %v232
    %v234 = vrot.slane %v233, 2
    %v235 = vadd.f32 %v233, %v234
    %v236 = vrot.slane %v235, 1
    %v237 = vadd.f32 %v235, %v236
    %v238 = vrot.slane %v159, 4
    %v239 = vadd.f32 %v159, %v238
    %v240 = vrot.slane %v239, 2
    %v241 = vadd.f32 %v239, %v240
    %v242 = vrot.slane %v241, 1
    %v243 = vadd.f32 %v241, %v242
    %v244 = vrot.slane %v161, 4
    %v245 = vadd.f32 %v161, %v244
    %v246 = vrot.slane %v245, 2
    %v247 = vadd.f32 %v245, %v246
    %v248 = vrot.slane %v247, 1
    %v249 = vadd.f32 %v247, %v248
    %v250 = vrot.slane %v163, 4
    %v251 = vadd.f32 %v163, %v250
    %v252 = vrot.slane %v251, 2
    %v253 = vadd.f32 %v251, %v252
    %v254 = vrot.slane %v253, 1
    %v255 = vadd.f32 %v253, %v254
    %v256 = vrot.slane %v165, 4
    %v257 = vadd.f32 %v165, %v256
    %v258 = vrot.slane %v257, 2
    %v259 = vadd.f32 %v257, %v258
    %v260 = vrot.slane %v259, 1
    %v261 = vadd.f32 %v259, %v260
    %v262 = vrot.slane %v167, 4
    %v263 = vadd.f32 %v167, %v262
    %v264 = vrot.slane %v263, 2
    %v265 = vadd.f32 %v263, %v264
    %v266 = vrot.slane %v265, 1
    %v267 = vadd.f32 %v265, %v266
    %v268 = vrot.slane %v169, 4
    %v269 = vadd.f32 %v169, %v268
    %v270 = vrot.slane %v269, 2
    %v271 = vadd.f32 %v269, %v270
    %v272 = vrot.slane %v271, 1
    %v273 = vadd.f32 %v271, %v272
    %v274 = vrcp.pop %v231
    %v275 = vmul.f32 %v183, %v274
    %v276 = vrcp.pop %v237
    %v277 = vmul.f32 %v189, %v276
    %v278 = vrcp.pop %v243
    %v279 = vmul.f32 %v195, %v278
    %v280 = vrcp.pop %v249
    %v281 = vmul.f32 %v201, %v280
    %v282 = vrcp.pop %v255
    %v283 = vmul.f32 %v207, %v282
    %v284 = vrcp.pop %v261
    %v285 = vmul.f32 %v213, %v284
    %v286 = vrcp.pop %v267
    %v287 = vmul.f32 %v219, %v286
    %v288 = vrcp.pop %v273
    %v289 = vmul.f32 %v225, %v288
    %vm298 = vcmask 1041409
    %v299 = vsel %vm298, %v277, %v275
    %vm300 = vcmask 1042434
    %v301 = vsel %vm300, %v279, %v299
    %vm302 = vcmask 1043459
    %v303 = vsel %vm302, %v281, %v301
    %vm304 = vcmask 1044484
    %v305 = vsel %vm304, %v283, %v303
    %vm306 = vcmask 1045509
    %v307 = vsel %vm306, %v285, %v305
    %vm308 = vcmask 1046534
    %v309 = vsel %vm308, %v287, %v307
    %vm310 = vcmask 1047559
    %v311 = vsel %vm310, %v289, %v309
    %313 = vst [vmem:[#allocation7] sm:$0xff] %v311
    // Predicated region
    $region22: #{tpu_custom_call.1} parent=1 // pred_check
      _
    $region23: #{tpu_custom_call.1} parent=1 // pred_check_branch
      %315 = sbr.rel (0) target = $region25
    $region24: #{tpu_custom_call.1} parent=1 // pred_region
      %s317 = ssub.s32 128, 128
      %318 = vsyncadd [#allocation4], %s317
      %s320 = sshll.u32 [#allocation7], 4
      %s321 = int_to_ptr.vmem [resolvable:$true] %s320
      %323 = dma.vmem_to_hbm [thread:$0]  %s321, 128, %s3, [#allocation4]
    $region25: #{tpu_custom_call.1} parent=1 // pred_fallthru
      _
    // Predicated region
    $region26: #{tpu_custom_call.1} parent=1 // pred_check
      _
    $region27: #{tpu_custom_call.1} parent=1 // pred_check_branch
      %325 = sbr.rel (0) target = $region29
    $region28: #{tpu_custom_call.1} parent=1 // pred_region
      %326 = dma.done [#allocation4], 128
    $region29: #{tpu_custom_call.1} parent=1 // pred_fallthru
      _
    %327 = vsyncpa [#allocation3], 1
    %328 = vsyncpa [#allocation6], 1
    %329 = vsyncpa [#allocation4], 1

</llo_original>
